<compile_context>
chip_gen: v5e
topology: v5e:2x2
jax: 0.10.0
libtpu: 0.0.40
codegen_flags: <defaults>
</compile_context>

<pallas_src>
import functools
import math

import jax
import jax.numpy as jnp
from jax import lax
from jax.experimental import pallas as pl
from jax.experimental.pallas import tpu as pltpu


def _round_up(v, m):
    return (v + m - 1) // m * m


def _memory_unit_kernel(x_ref, w_ref, out_ref, att_ref, *,
                        shrink_thres, mem_valid, mem_padded):
    x = x_ref[...]                       # (TM, Fp)  input dtype -> MXU native
    w = w_ref[...]                       # (Mp, Fp)  input dtype

    # logits = x @ W^T, without materializing an in-kernel transpose:
    # contract the fea_dim of both operands directly on the MXU.
    logits = lax.dot_general(
        x, w,
        dimension_numbers=(((1,), (1,)), ((), ())),
        preferred_element_type=jnp.float32,
    )                                    # (TM, Mp) fp32

    # Mask padded memory slots so they do not pollute the softmax.
    if mem_padded > mem_valid:
        col = lax.broadcasted_iota(jnp.int32, logits.shape, 1)
        logits = jnp.where(col < mem_valid, logits, jnp.float32(-1e30))

    # Softmax over the memory dimension (fp32); reciprocal on the EUP
    # replaces the per-element divide.
    m = jnp.max(logits, axis=-1, keepdims=True)
    e = jnp.exp(logits - m)
    att = e * pl.reciprocal(jnp.sum(e, axis=-1, keepdims=True), approx=False)

    inv_l1 = None
    if shrink_thres > 0.0:
        eps = 1e-12
        shifted = att - shrink_thres
        att = (jnp.maximum(shifted, 0.0) * att
               * pl.reciprocal(jnp.abs(shifted) + eps, approx=False))
        # L1 normalization commutes with `att @ W`; fold it into the epilogue.
        inv_l1 = pl.reciprocal(
            jnp.maximum(jnp.sum(jnp.abs(att), axis=-1, keepdims=True), 1e-12),
            approx=False,
        )

    # Reconstruction matmul on the MXU (input dtype inputs, fp32 accumulation).
    out = jnp.dot(att.astype(w.dtype), w, preferred_element_type=jnp.float32)

    if inv_l1 is not None:
        out = out * inv_l1
        att = att * inv_l1

    out_ref[...] = out.astype(out_ref.dtype)
    att_ref[...] = att.astype(att_ref.dtype)


def memory_unit_forward(x, weight, shrink_thres=0.0025, *, tile_m=256):
    """x: (N, fea_dim), weight: (mem_dim, fea_dim). Returns (output, att)."""
    n, fea_dim = x.shape
    mem_dim, fea_dim_w = weight.shape
    assert fea_dim == fea_dim_w

    # Lane-dense padding of the feature / memory axes (multiples of 128).
    fea_pad = _round_up(fea_dim, 128)
    mem_pad = _round_up(mem_dim, 128)

    # Row tile: multiple of 8 sublanes, no larger than (padded) N, and capped
    # so the double-buffered working set stays inside the default ~32 MiB
    # scoped-VMEM limit (v7x-safe; v5e/v6e have more headroom).
    bytes_per = 4

    def _vmem_bytes(t):
        xb = 2 * t * fea_pad * bytes_per            # x (double-buffered)
        ob = 2 * t * fea_pad * bytes_per            # out
        ab = 2 * t * mem_pad * bytes_per            # att
        wb = 2 * mem_pad * fea_pad * bytes_per      # weight (double-buffered)
        sc = 4 * t * mem_pad * bytes_per            # fp32 intermediates
        return xb + ob + ab + wb + sc

    tile = max(8, min(_round_up(int(tile_m), 8), _round_up(n, 8)))
    budget = 24 * 1024 * 1024
    while tile > 8 and _vmem_bytes(tile) > budget:
        tile -= 8
    tile_m = tile

    # Pad N to a multiple of tile_m (tail handled by padding + final slice).
    n_pad = _round_up(n, tile_m)

    xp = jnp.pad(x, ((0, n_pad - n), (0, fea_pad - fea_dim)))
    wp = jnp.pad(weight.astype(x.dtype),
                 ((0, mem_pad - mem_dim), (0, fea_pad - fea_dim)))

    kernel = functools.partial(
        _memory_unit_kernel,
        shrink_thres=float(shrink_thres),
        mem_valid=mem_dim,
        mem_padded=mem_pad,
    )

    grid = (n_pad // tile_m,)
    out_p, att_p = pl.pallas_call(
        kernel,
        out_shape=(
            jax.ShapeDtypeStruct((n_pad, fea_pad), x.dtype),     # output
            jax.ShapeDtypeStruct((n_pad, mem_pad), jnp.float32),  # att (fp32)
        ),
        grid_spec=pltpu.PrefetchScalarGridSpec(
            num_scalar_prefetch=0,
            grid=grid,
            in_specs=[
                pl.BlockSpec((tile_m, fea_pad), lambda i: (i, 0)),   # x tile
                # Weight index_map is constant -> Pallas keeps the same block
                # resident across the grid (no per-step re-DMA of W).
                pl.BlockSpec((mem_pad, fea_pad), lambda i: (0, 0)),
            ],
            out_specs=[
                pl.BlockSpec((tile_m, fea_pad), lambda i: (i, 0)),
                pl.BlockSpec((tile_m, mem_pad), lambda i: (i, 0)),
            ],
        ),
        compiler_params=pltpu.CompilerParams(
            dimension_semantics=("parallel",),
        ),
    )(xp, wp)

    return out_p[:n, :fea_dim], att_p[:n, :mem_dim]


def _reference(x, weight, shrink_thres=0.0025):
    logits = x @ weight.T
    logits = logits - jnp.max(logits, axis=1, keepdims=True)
    e = jnp.exp(logits)
    att = e / jnp.sum(e, axis=1, keepdims=True)
    if shrink_thres > 0:
        eps = 1e-12
        shifted = att - shrink_thres
        att = jnp.maximum(shifted, 0.0) * att / (jnp.abs(shifted) + eps)
        att = att / jnp.maximum(jnp.sum(jnp.abs(att), axis=1, keepdims=True), 1e-12)
    out = att @ weight
    return out, att


def _run_case(key, n, mem_dim, fea_dim, shrink_thres):
    k_w, k_x = jax.random.split(key)
    stdv = 1.0 / math.sqrt(fea_dim)
    weight = jax.random.uniform(
        k_w, (mem_dim, fea_dim), dtype=jnp.float32, minval=-stdv, maxval=stdv
    )
    x = jax.random.normal(k_x, (n, fea_dim), dtype=jnp.float32)

    out, att = memory_unit_forward(x, weight, shrink_thres)
    jax.block_until_ready((out, att))

    ref_out, ref_att = _reference(x, weight, shrink_thres)
    assert out.shape == (n, fea_dim) and att.shape == (n, mem_dim)
    assert jnp.allclose(out, ref_out, atol=1e-4, rtol=1e-4)
    assert jnp.allclose(att, ref_att, atol=1e-4, rtol=1e-4)


if __name__ == "__main__":
    key = jax.random.PRNGKey(0)
    k1, k2 = jax.random.split(key)

    # Small case matching the module defaults (exercises lane padding).
    _run_case(k1, n=8, mem_dim=64, fea_dim=32, shrink_thres=0.0025)
    # Ragged-N case with non-128-multiple dims (exercises padded tail + mask).
    _run_case(k2, n=50, mem_dim=100, fea_dim=96, shrink_thres=0.0025)

    print("KERNEL_OK")
</pallas_src>

<mosaic_0001>
module attributes {stable_mosaic.version = 11 : i64} {
  func.func @_memory_unit_kernel(%arg0: i32, %arg1: memref<8x128xf32, #tpu.memory_space<vmem>>, %arg2: memref<128x128xf32, #tpu.memory_space<vmem>>, %arg3: memref<8x128xf32, #tpu.memory_space<vmem>>, %arg4: memref<8x128xf32, #tpu.memory_space<vmem>>) attributes {dimension_semantics = [#tpu.dimension_semantics<parallel>], iteration_bounds = array<i64: 1>, scalar_prefetch = 0 : i64, scratch_operands = 0 : i64, tpu.core_type = #tpu.core_type<tc>, window_params = [{transform_indices = @transform_0, window_bounds = array<i64: 8, 128>}, {pipeline_mode = #tpu.pipeline_mode<synchronous>, transform_indices = @transform_1, window_bounds = array<i64: 128, 128>}, {transform_indices = @transform_2, window_bounds = array<i64: 8, 128>}, {transform_indices = @transform_3, window_bounds = array<i64: 8, 128>}]} {
    %c0 = arith.constant 0 : index
    %c0_0 = arith.constant 0 : index
    %0 = vector.load %arg1[%c0, %c0_0] : memref<8x128xf32, #tpu.memory_space<vmem>>, vector<8x128xf32>
    %c0_1 = arith.constant 0 : index
    %c0_2 = arith.constant 0 : index
    %1 = vector.load %arg2[%c0_1, %c0_2] : memref<128x128xf32, #tpu.memory_space<vmem>>, vector<128x128xf32>
    %cst = arith.constant dense<0.000000e+00> : vector<8x128xf32>
    %2 = tpu.matmul %0, %1, %cst {dimension_numbers = #tpu.dot_dimension_numbers<[1], [1], [0], [0], [0, 0, 1, 0], [], []>} : vector<8x128xf32>, vector<128x128xf32>, vector<8x128xf32> -> vector<8x128xf32>
    %3 = tpu.iota {dimensions = array<i32: 1>} : vector<8x128xi32>
    %c64_i32 = arith.constant 64 : i32
    %4 = vector.broadcast %c64_i32 : i32 to vector<8x128xi32>
    %5 = arith.cmpi slt, %3, %4 : vector<8x128xi32>
    %cst_3 = arith.constant -1.000000e+30 : f32
    %6 = vector.broadcast %cst_3 : f32 to vector<8x128xf32>
    %7 = arith.select %5, %2, %6 : vector<8x128xi1>, vector<8x128xf32>
    %cst_4 = arith.constant dense<0xFF800000> : vector<8xf32>
    %8 = vector.multi_reduction <maximumf>, %7, %cst_4 [1] : vector<8x128xf32> to vector<8xf32>
    %9 = vector.shape_cast %8 : vector<8xf32> to vector<8x1xf32>
    %10 = vector.broadcast %9 : vector<8x1xf32> to vector<8x128xf32>
    %11 = arith.subf %7, %10 : vector<8x128xf32>
    %12 = math.exp %11 : vector<8x128xf32>
    %cst_5 = arith.constant dense<0.000000e+00> : vector<8xf32>
    %13 = vector.multi_reduction <add>, %12, %cst_5 [1] : vector<8x128xf32> to vector<8xf32>
    %14 = vector.shape_cast %13 : vector<8xf32> to vector<8x1xf32>
    %15 = tpu.reciprocal %14 : vector<8x1xf32> -> vector<8x1xf32>
    %16 = vector.broadcast %15 : vector<8x1xf32> to vector<8x128xf32>
    %17 = arith.mulf %12, %16 : vector<8x128xf32>
    %cst_6 = arith.constant 2.500000e-03 : f32
    %18 = vector.broadcast %cst_6 : f32 to vector<8x128xf32>
    %19 = arith.subf %17, %18 : vector<8x128xf32>
    %cst_7 = arith.constant 0.000000e+00 : f32
    %20 = vector.broadcast %cst_7 : f32 to vector<8x128xf32>
    %21 = arith.maximumf %19, %20 : vector<8x128xf32>
    %22 = arith.mulf %21, %17 : vector<8x128xf32>
    %23 = math.absf %19 : vector<8x128xf32>
    %cst_8 = arith.constant 9.99999996E-13 : f32
    %24 = vector.broadcast %cst_8 : f32 to vector<8x128xf32>
    %25 = arith.addf %23, %24 : vector<8x128xf32>
    %26 = tpu.reciprocal %25 : vector<8x128xf32> -> vector<8x128xf32>
    %27 = arith.mulf %22, %26 : vector<8x128xf32>
    %28 = math.absf %27 : vector<8x128xf32>
    %cst_9 = arith.constant dense<0.000000e+00> : vector<8xf32>
    %29 = vector.multi_reduction <add>, %28, %cst_9 [1] : vector<8x128xf32> to vector<8xf32>
    %30 = vector.shape_cast %29 : vector<8xf32> to vector<8x1xf32>
    %cst_10 = arith.constant 9.99999996E-13 : f32
    %31 = vector.broadcast %cst_10 : f32 to vector<8x1xf32>
    %32 = arith.maximumf %30, %31 : vector<8x1xf32>
    %33 = tpu.reciprocal %32 : vector<8x1xf32> -> vector<8x1xf32>
    %cst_11 = arith.constant dense<0.000000e+00> : vector<8x128xf32>
    %34 = tpu.matmul %27, %1, %cst_11 {dimension_numbers = #tpu.dot_dimension_numbers<[1], [0], [0], [1], [0, 0, 1, 1], [], []>} : vector<8x128xf32>, vector<128x128xf32>, vector<8x128xf32> -> vector<8x128xf32>
    %35 = vector.broadcast %33 : vector<8x1xf32> to vector<8x128xf32>
    %36 = arith.mulf %34, %35 : vector<8x128xf32>
    %37 = vector.broadcast %33 : vector<8x1xf32> to vector<8x128xf32>
    %38 = arith.mulf %27, %37 : vector<8x128xf32>
    %c0_12 = arith.constant 0 : index
    %c0_13 = arith.constant 0 : index
    %39 = vector.load %arg3[%c0_12, %c0_13] : memref<8x128xf32, #tpu.memory_space<vmem>>, vector<8x128xf32>
    tpu.vector_store %arg3[%c0_12, %c0_13], %36 {strides = array<i32>} : memref<8x128xf32, #tpu.memory_space<vmem>>, vector<8x128xf32>,
    %c0_14 = arith.constant 0 : index
    %c0_15 = arith.constant 0 : index
    %40 = vector.load %arg4[%c0_14, %c0_15] : memref<8x128xf32, #tpu.memory_space<vmem>>, vector<8x128xf32>
    tpu.vector_store %arg4[%c0_14, %c0_15], %38 {strides = array<i32>} : memref<8x128xf32, #tpu.memory_space<vmem>>, vector<8x128xf32>,
    return
  }
  func.func @transform_0(%arg0: i32) -> (i32, i32) {
    %c0_i32 = arith.constant 0 : i32
    %c0_i32_0 = arith.constant 0 : i32
    return %arg0, %c0_i32 : i32, i32
  }
  func.func @transform_1(%arg0: i32) -> (i32, i32) {
    %c0_i32 = arith.constant 0 : i32
    %c0_i32_0 = arith.constant 0 : i32
    %c0_i32_1 = arith.constant 0 : i32
    return %c0_i32, %c0_i32_0 : i32, i32
  }
  func.func @transform_2(%arg0: i32) -> (i32, i32) {
    %c0_i32 = arith.constant 0 : i32
    %c0_i32_0 = arith.constant 0 : i32
    return %arg0, %c0_i32 : i32, i32
  }
  func.func @transform_3(%arg0: i32) -> (i32, i32) {
    %c0_i32 = arith.constant 0 : i32
    %c0_i32_0 = arith.constant 0 : i32
    return %arg0, %c0_i32 : i32, i32
  }
}

</mosaic_0001>

<llo_original>
// kernel: tpu_custom_call.1
$region0: #{tpu_custom_call.1}
  #allocation0 [shape = 'u32[]', space=smem, size = 0x4, offset = 0x4, fixed_abs, tag = 'smem constant byte address 0x4 - core index']
  #allocation1 [shape = 'u32[72,128]{1,0:T(1,128)}', space=vmem, size = 0x9000, scoped, tag = 'internal scratch']
  %s0 = inlined_call_operand.hbm [shape: f32[8,128], index: 0, kind: input, shape index: {}]
  %s1 = inlined_call_operand.hbm [shape: f32[128,128], index: 1, kind: input, shape index: {}]
  %s2 = inlined_call_operand.hbm [shape: f32[8,128], index: 2, kind: output, shape index: {0}]
  %s3 = inlined_call_operand.hbm [shape: f32[8,128], index: 3, kind: output, shape index: {1}]
  %4 = xla_tuple %s2, %s3
  %s5 = sld [smem:[#allocation0]]
  $region34: #{tpu_custom_call.1} parent=0
    _
  %s7 = ssub.s32 1, %s5
  %s8 = scalar_select 0, %s7, %s5
  $region1: #{tpu_custom_call.1} parent=0
    #allocation2 [shape = 'u8[4096]{0}', space=vmem, size = 0x1000, scoped, tag = 'input window, operand 0, single buffered']
    #allocation3 [shape = 's32[1]{0}', space=sflag, size = 0x4, scoped, tag = 'scoped memory for tpu_custom_call.1']
    #allocation4 [shape = 's32[1]{0}', space=sflag, size = 0x4, scoped, tag = 'scoped memory for tpu_custom_call.1']
    #allocation5 [shape = 'u8[65536]{0}', space=vmem, size = 0x10000, scoped, tag = 'input window, operand 1, single buffered']
    #allocation6 [shape = 's32[1]{0}', space=sflag, size = 0x4, scoped, tag = 'scoped memory for tpu_custom_call.1']
    #allocation7 [shape = 'u8[4096]{0}', space=vmem, size = 0x1000, scoped, tag = 'output window, operand 0, single buffered']
    #allocation8 [shape = 'u8[4096]{0}', space=vmem, size = 0x1000, scoped, tag = 'output window, operand 1, single buffered']
    #allocation9 [shape = 's32[1]{0}', space=sflag, size = 0x4, scoped, tag = 'scoped memory for tpu_custom_call.1']
    %9 = vsyncpa [#allocation3], 0
    %10 = vsyncpa [#allocation6], 0
    %11 = vsyncpa [#allocation4], 0
    %12 = vsyncpa [#allocation9], 0
    // Predicated region
    $region2: #{tpu_custom_call.1} parent=1 // pred_check
      _
    $region3: #{tpu_custom_call.1} parent=1 // pred_check_branch
      %14 = sbr.rel (0) target = $region5
    $region4: #{tpu_custom_call.1} parent=1 // pred_region
      %16 = vsyncadd [#allocation3], 0
      %s18 = sshll.u32 %s0, 4
      %s19 = int_to_ptr.hbm [resolvable:$true] %s18
      %s20 = sshll.u32 [#allocation2], 4
      %s21 = int_to_ptr.vmem [resolvable:$true] %s20
      %23 = dma.hbm_to_vmem [thread:$0]  %s19, 128, %s21, [#allocation3]
    $region5: #{tpu_custom_call.1} parent=1 // pred_fallthru
      _
    // Predicated region
    $region6: #{tpu_custom_call.1} parent=1 // pred_check
      _
    $region7: #{tpu_custom_call.1} parent=1 // pred_check_branch
      %25 = sbr.rel (0) target = $region9
    $region8: #{tpu_custom_call.1} parent=1 // pred_region
      %27 = vsyncadd [#allocation6], 0
      %s28 = sshll.u32 %s1, 4
      %s29 = int_to_ptr.hbm [resolvable:$true] %s28
      %s30 = sshll.u32 [#allocation5], 4
      %s31 = int_to_ptr.vmem [resolvable:$true] %s30
      %36 = dma.hbm_to_vmem [thread:$0]  %s29, 2048, %s31, [#allocation6], 128, 128, 8
    $region9: #{tpu_custom_call.1} parent=1 // pred_fallthru
      _
    // Predicated region
    $region10: #{tpu_custom_call.1} parent=1 // pred_check
      _
    $region11: #{tpu_custom_call.1} parent=1 // pred_check_branch
      %38 = sbr.rel (0) target = $region13
    $region12: #{tpu_custom_call.1} parent=1 // pred_region
      %40 = dma.done [#allocation3], 128
    $region13: #{tpu_custom_call.1} parent=1 // pred_fallthru
      _
    // Predicated region
    $region14: #{tpu_custom_call.1} parent=1 // pred_check
      _
    $region15: #{tpu_custom_call.1} parent=1 // pred_check_branch
      %42 = sbr.rel (0) target = $region17
    $region16: #{tpu_custom_call.1} parent=1 // pred_region
      %44 = dma.done [#allocation6], 2048
    $region17: #{tpu_custom_call.1} parent=1 // pred_fallthru
      _
    %v45 = vld [vmem:[#allocation2] sm:$0xff]
    %v46 = vld [vmem:[#allocation5] sm:$0xff]
    %v47 = vld [vmem:[#allocation5 + $0x8] sm:$0xff]
    %v48 = vld [vmem:[#allocation5 + $0x10] sm:$0xff]
    %v49 = vld [vmem:[#allocation5 + $0x18] sm:$0xff]
    %v50 = vld [vmem:[#allocation5 + $0x20] sm:$0xff]
    %v51 = vld [vmem:[#allocation5 + $0x28] sm:$0xff]
    %v52 = vld [vmem:[#allocation5 + $0x30] sm:$0xff]
    %v53 = vld [vmem:[#allocation5 + $0x38] sm:$0xff]
    %v54 = vld [vmem:[#allocation5 + $0x40] sm:$0xff]
    %v55 = vld [vmem:[#allocation5 + $0x48] sm:$0xff]
    %v56 = vld [vmem:[#allocation5 + $0x50] sm:$0xff]
    %v57 = vld [vmem:[#allocation5 + $0x58] sm:$0xff]
    %v58 = vld [vmem:[#allocation5 + $0x60] sm:$0xff]
    %v59 = vld [vmem:[#allocation5 + $0x68] sm:$0xff]
    %v60 = vld [vmem:[#allocation5 + $0x70] sm:$0xff]
    %v61 = vld [vmem:[#allocation5 + $0x78] sm:$0xff]
    %62 = vmatpush.xpose.msra.mxu0 %v61
    %63 = vmatpush.xpose.msra.mxu0 %v60
    %64 = vmatpush.xpose.msra.mxu0 %v59
    %65 = vmatpush.xpose.msra.mxu0 %v58
    %66 = vmatpush.xpose.msra.mxu0 %v57
    %67 = vmatpush.xpose.msra.mxu0 %v56
    %68 = vmatpush.xpose.msra.mxu0 %v55
    %69 = vmatpush.xpose.msra.mxu0 %v54
    %70 = vmatpush.xpose.msra.mxu0 %v53
    %71 = vmatpush.xpose.msra.mxu0 %v52
    %72 = vmatpush.xpose.msra.mxu0 %v51
    %73 = vmatpush.xpose.msra.mxu0 %v50
    %74 = vmatpush.xpose.msra.mxu0 %v49
    %75 = vmatpush.xpose.msra.mxu0 %v48
    %76 = vmatpush.xpose.msra.mxu0 %v47
    %77 = vmatpush.xpose.msra.mxu0 %v46
    %78 = vmatmul.f32.gmra.mxu0 %v45
    %v79 = vpop.f32.mrf.mxu0
    %v80 = vadd.f32 0.0, %v79
    %81 = vdwg.mxu0
    %v82 = vlaneseq
    %v83 = vand.u32 %v82, 127
    %vm84 = vcmp.lt.s32.totalorder %v83, 64
    %v85 = vsel %vm84, %v80, -1e+30
    %86 = vmax.xlane.f32.xlu0 %v85
    %v87 = vpop.xlane.xlu0 %86
    %v88 = vsub.f32 %v85, %v87
    %v89 = vmul.f32 %v88, 1.442695
    %v90 = vpow.pop %v89
    %91 = vadd.xlane.f32.xlu0 %v90
    %v92 = vpop.xlane.xlu0 %91
    %v93 = vrcp.pop %v92
    %v94 = vmul.f32 %v92, %v93
    %v95 = vsub.f32 1.0, %v94
    %v96 = vmul.f32 %v93, %v95
    %v97 = vadd.f32 %v93, %v96
    %vm98 = vweird.f32 %v92
    %vm99 = vweird.f32 %v93
    %vm100 = vmor %vm98, %vm99
    %v101 = vsel %vm100, %v93, %v97
    %v102 = vand.u32 2147483647, %v92
    %vm103 = vcmp.eq.f32.partialorder %v102, 8.507059e+37
    %v104 = vand.u32 %v92, 2147483648
    %v105 = vor.u32 1.1754944e-38, %v104
    %v106 = vsel %vm103, %v105, %v101
    %v107 = vmul.f32 %v90, %v106
    %v108 = vsub.f32 %v107, 0.0025
    %v109 = vmax.f32 %v108, 0.0
    %v110 = vmul.f32 %v109, %v107
    %v111 = vand.u32 2147483647, %v108
    %v112 = vadd.f32 %v111, 1e-12
    %v113 = vrcp.pop %v112
    %v114 = vmul.f32 %v112, %v113
    %v115 = vsub.f32 1.0, %v114
    %v116 = vmul.f32 %v113, %v115
    %v117 = vadd.f32 %v113, %v116
    %vm118 = vweird.f32 %v112
    %vm119 = vweird.f32 %v113
    %vm120 = vmor %vm118, %vm119
    %v121 = vsel %vm120, %v113, %v117
    %v122 = vand.u32 2147483647, %v112
    %vm123 = vcmp.eq.f32.partialorder %v122, 8.507059e+37
    %v124 = vand.u32 %v112, 2147483648
    %v125 = vor.u32 1.1754944e-38, %v124
    %v126 = vsel %vm123, %v125, %v121
    %v127 = vmul.f32 %v110, %v126
    %v128 = vand.u32 2147483647, %v127
    %129 = vadd.xlane.f32.xlu0 %v128
    %v130 = vpop.xlane.xlu0 %129
    %v131 = vmax.f32 %v130, 1e-12
    %v132 = vrcp.pop %v131
    %v133 = vmul.f32 %v131, %v132
    %v134 = vsub.f32 1.0, %v133
    %v135 = vmul.f32 %v132, %v134
    %v136 = vadd.f32 %v132, %v135
    %vm137 = vweird.f32 %v131
    %vm138 = vweird.f32 %v132
    %vm139 = vmor %vm137, %vm138
    %v140 = vsel %vm139, %v132, %v136
    %v141 = vand.u32 2147483647, %v131
    %vm142 = vcmp.eq.f32.partialorder %v141, 8.507059e+37
    %v143 = vand.u32 %v131, 2147483648
    %v144 = vor.u32 1.1754944e-38, %v143
    %v145 = vsel %vm142, %v144, %v140
    %146 = vmatpush.msra.mxu0 %v61
    %147 = vmatpush.msra.mxu0 %v60
    %148 = vmatpush.msra.mxu0 %v59
    %149 = vmatpush.msra.mxu0 %v58
    %150 = vmatpush.msra.mxu0 %v57
    %151 = vmatpush.msra.mxu0 %v56
    %152 = vmatpush.msra.mxu0 %v55
    %153 = vmatpush.msra.mxu0 %v54
    %154 = vmatpush.msra.mxu0 %v53
    %155 = vmatpush.msra.mxu0 %v52
    %156 = vmatpush.msra.mxu0 %v51
    %157 = vmatpush.msra.mxu0 %v50
    %158 = vmatpush.msra.mxu0 %v49
    %159 = vmatpush.msra.mxu0 %v48
    %160 = vmatpush.msra.mxu0 %v47
    %161 = vmatpush.msra.mxu0 %v46
    %162 = vmatmul.f32.gmra.mxu0 %v127
    %v163 = vpop.f32.mrf.mxu0
    %v164 = vadd.f32 0.0, %v163
    %165 = vdwg.mxu0
    %v166 = vmul.f32 %v164, %v145
    %v167 = vmul.f32 %v127, %v145
    %168 = vst [vmem:[#allocation7] sm:$0xff] %v166
    %169 = vst [vmem:[#allocation8] sm:$0xff] %v167
    // Predicated region
    $region18: #{tpu_custom_call.1} parent=1 // pred_check
      _
    $region19: #{tpu_custom_call.1} parent=1 // pred_check_branch
      %171 = sbr.rel (0) target = $region21
    $region20: #{tpu_custom_call.1} parent=1 // pred_region
      %173 = vsyncadd [#allocation4], 0
      %s175 = sshll.u32 [#allocation7], 4
      %s176 = int_to_ptr.vmem [resolvable:$true] %s175
      %s177 = sshll.u32 %s2, 4
      %s178 = int_to_ptr.hbm [resolvable:$true] %s177
      %180 = dma.vmem_to_hbm [thread:$0]  %s176, 128, %s178, [#allocation4]
    $region21: #{tpu_custom_call.1} parent=1 // pred_fallthru
      _
    // Predicated region
    $region22: #{tpu_custom_call.1} parent=1 // pred_check
      _
    $region23: #{tpu_custom_call.1} parent=1 // pred_check_branch
      %182 = sbr.rel (0) target = $region25
    $region24: #{tpu_custom_call.1} parent=1 // pred_region
      %184 = vsyncadd [#allocation9], 0
      %s186 = sshll.u32 [#allocation8], 4
      %s187 = int_to_ptr.vmem [resolvable:$true] %s186
      %s188 = sshll.u32 %s3, 4
      %s189 = int_to_ptr.hbm [resolvable:$true] %s188
      %191 = dma.vmem_to_hbm [thread:$0]  %s187, 128, %s189, [#allocation9]
    $region25: #{tpu_custom_call.1} parent=1 // pred_fallthru
      _
    // Predicated region
    $region26: #{tpu_custom_call.1} parent=1 // pred_check
      _
    $region27: #{tpu_custom_call.1} parent=1 // pred_check_branch
      %193 = sbr.rel (0) target = $region29
    $region28: #{tpu_custom_call.1} parent=1 // pred_region
      %195 = dma.done [#allocation4], 128
    $region29: #{tpu_custom_call.1} parent=1 // pred_fallthru
      _
    // Predicated region
    $region30: #{tpu_custom_call.1} parent=1 // pred_check
      _
    $region31: #{tpu_custom_call.1} parent=1 // pred_check_branch
      %197 = sbr.rel (0) target = $region33
    $region32: #{tpu_custom_call.1} parent=1 // pred_region
      %199 = dma.done [#allocation9], 128
    $region33: #{tpu_custom_call.1} parent=1 // pred_fallthru
      _
    %200 = vsyncpa [#allocation3], 1
    %201 = vsyncpa [#allocation6], 1
    %202 = vsyncpa [#allocation4], 1
    %203 = vsyncpa [#allocation9], 1

</llo_original>
